<compile_context>
chip_gen: v7x
topology: tpu7x:2x2x1
jax: 0.10.0
libtpu: 0.0.40
codegen_flags: <defaults>
</compile_context>

<pallas_src>
import functools
import math

import jax
import jax.numpy as jnp
from jax.experimental import pallas as pl
from jax.experimental.pallas import tpu as pltpu


def _round_up(x, m):
    return ((x + m - 1) // m) * m


_INV_SQRT2 = 0.7071067811865476
_SQRT_2_OVER_PI = 0.7978845608028654


def _gelu(h, exact):
    if exact:
        # Exact erf form: matches PyTorch nn.GELU() default.
        return 0.5 * h * (1.0 + jax.lax.erf(h * _INV_SQRT2))
    # TODO(synk): tanh-approx fallback only if erf has no Mosaic lowering (~1e-3 max abs diff).
    inner = _SQRT_2_OVER_PI * (h + 0.044715 * (h * h * h))
    return 0.5 * h * (1.0 + jnp.tanh(inner))


@functools.lru_cache(maxsize=1)
def _erf_lowers_on_tpu():
    """Probe once whether lax.erf lowers inside a Pallas TPU kernel."""
    def probe(x_ref, o_ref):
        o_ref[...] = jax.lax.erf(x_ref[...])
    try:
        x = jnp.zeros((8, 128), jnp.float32)
        jax.block_until_ready(
            pl.pallas_call(probe, out_shape=jax.ShapeDtypeStruct((8, 128), jnp.float32))(x))
        return True
    except Exception:
        return False


def mlp_kernel(x_ref, w1_ref, b1_ref, w2_ref, b2_ref, o_ref, acc_ref, *,
               matmul_dtype, exact_gelu):
    """One (row-tile, hidden-tile) step of the fused MLP.

    x_ref:   (TM, D_in)        input dtype; cast to matmul_dtype in VMEM
    w1_ref:  (D_in, TH)        matmul_dtype (streamed along H, or resident if H fits)
    b1_ref:  (1, TH)           f32
    w2_ref:  (TH, D_out_pad)   matmul_dtype
    b2_ref:  (1, D_out_pad)    f32 (grid-constant, single-buffered)
    o_ref:   (TM, D_out_pad)   lane-dense output tile (D_out_pad % 128 == 0)
    acc_ref: (TM, D_out_pad)   f32 scratch accumulator across the H grid axis
    """
    h_step = pl.program_id(1)

    @pl.when(h_step == 0)
    def _():
        acc_ref[...] = jnp.zeros_like(acc_ref)

    # fc1 on the MXU (bf16 inputs by default), f32 accumulation; in-kernel x cast.
    h = jnp.dot(x_ref[...].astype(matmul_dtype), w1_ref[...],
                preferred_element_type=jnp.float32)
    h = h + b1_ref[...]

    # GELU (erf goes to the EUP slot; padded hidden columns have W=0,b=0 -> GELU(0)=0).
    h = _gelu(h, exact_gelu)

    # Dropout(p=0.0) -> identity (not emitted).

    # fc2 partial product for this hidden slice, accumulated in f32.
    acc_ref[...] += jnp.dot(h.astype(matmul_dtype), w2_ref[...],
                            preferred_element_type=jnp.float32)

    @pl.when(h_step == pl.num_programs(1) - 1)
    def _():
        o_ref[...] = (acc_ref[...] + b2_ref[...]).astype(o_ref.dtype)


def _block_spec(shape, index_map, *, single_buffer=False):
    if single_buffer:
        try:
            return pl.BlockSpec(shape, index_map, pipeline_mode=pl.Buffered(1))
        except Exception:  # older jax without pipeline_mode / Buffered
            pass
    return pl.BlockSpec(shape, index_map)


def mlp_forward(x, w1, b1, w2, b2, *, block_m=256, block_h=512,
                matmul_dtype=jnp.bfloat16):
    """x: (..., D_in).  w1: (D_in, H), b1: (H,), w2: (H, D_out), b2: (D_out,).

    matmul_dtype: MXU input dtype (bf16 default on all gens); accumulation stays f32.
    """
    *lead, d_in = x.shape
    h_dim = w1.shape[1]
    d_out = w2.shape[1]
    cdt = jnp.dtype(matmul_dtype)
    out_dtype = x.dtype
    exact_gelu = _erf_lowers_on_tpu()

    # Flatten leading dims into one row axis. Row tile rounded to the packed-sublane
    # multiple of the matmul dtype (8 f32 / 16 bf16 / 32 int8-fp8).
    sub = max(8, 32 // cdt.itemsize)
    x2 = x.reshape(-1, d_in)
    m = x2.shape[0]
    tm = min(_round_up(block_m, sub), _round_up(m, sub))
    m_pad = _round_up(m, tm)
    if m_pad != m:
        # Padded rows produce garbage (GELU(b1) @ W2 + b2) and are sliced off below.
        x2 = jnp.pad(x2, ((0, m_pad - m), (0, 0)))

    # Hidden-dim tiling (trailing "arbitrary" reduction axis) bounds TM*TH f32 temps +
    # weight slices in VMEM.  TH is a multiple of 128 (lane width).
    th = min(_round_up(block_h, 128), _round_up(h_dim, 128))
    h_pad = _round_up(h_dim, th)

    # Lane-dense output: pad D_out to a multiple of 128 (unmasked vst); sliced off after.
    d_out_pad = _round_up(d_out, 128)

    # Pre-cast / pre-pad weights once (small, one-time).  When calling repeatedly under
    # jit with fixed weights, hoist these out of the hot path (XLA will constant-fold).
    w1c = w1.astype(cdt)
    b1r = b1.astype(jnp.float32)
    w2c = w2.astype(cdt)
    b2r = b2.astype(jnp.float32)
    if h_pad != h_dim:
        w1c = jnp.pad(w1c, ((0, 0), (0, h_pad - h_dim)))
        b1r = jnp.pad(b1r, (0, h_pad - h_dim))          # GELU(0)=0 -> padded H is inert
        w2c = jnp.pad(w2c, ((0, h_pad - h_dim), (0, 0)))
    if d_out_pad != d_out:
        w2c = jnp.pad(w2c, ((0, 0), (0, d_out_pad - d_out)))
        b2r = jnp.pad(b2r, (0, d_out_pad - d_out))
    b1r = b1r.reshape(1, h_pad)
    b2r = b2r.reshape(1, d_out_pad)

    n_m = m_pad // tm
    n_h = h_pad // th
    # When H fits in one tile, the weight blocks are grid-constant -> single-buffer them.
    single_w = (n_h == 1)

    # Generation-aware VMEM budget (v5e/v6e: 128 MiB physical, v7x: 64 MiB).
    try:
        vmem_cap = int(pltpu.get_tpu_info().vmem_capacity_bytes)
    except Exception:
        vmem_cap = 64 * 1024 * 1024  # conservative (v7x)
    itm_w = cdt.itemsize
    w_buf = 1 if single_w else 2
    est = (w_buf * (d_in * th * itm_w + th * 4 + th * d_out_pad * itm_w)  # W1/b1/W2 slices
           + d_out_pad * 4                                                # b2 (1 buffer)
           + 2 * tm * d_in * jnp.dtype(x.dtype).itemsize                  # x tiles (2 bufs)
           + 2 * tm * d_out_pad * jnp.dtype(out_dtype).itemsize           # out tiles (2 bufs)
           + tm * d_out_pad * 4                                           # f32 accumulator
           + 2 * tm * th * 4)                                             # f32 hidden temps
    vmem_limit = int(min(int(0.75 * vmem_cap), max(8 * 1024 * 1024, int(1.3 * est))))

    kernel = functools.partial(mlp_kernel, matmul_dtype=cdt, exact_gelu=exact_gelu)

    out = pl.pallas_call(
        kernel,
        out_shape=jax.ShapeDtypeStruct((m_pad, d_out_pad), out_dtype),
        grid_spec=pltpu.PrefetchScalarGridSpec(
            num_scalar_prefetch=0,
            grid=(n_m, n_h),   # M "parallel" first (megacore on v7x), H reduction last.
            in_specs=[
                pl.BlockSpec((tm, d_in), lambda i, h: (i, 0)),             # x row-tile
                _block_spec((d_in, th), lambda i, h: (0, h), single_buffer=single_w),
                _block_spec((1, th), lambda i, h: (0, h), single_buffer=single_w),
                _block_spec((th, d_out_pad), lambda i, h: (h, 0), single_buffer=single_w),
                _block_spec((1, d_out_pad), lambda i, h: (0, 0), single_buffer=True),
            ],
            out_specs=pl.BlockSpec((tm, d_out_pad), lambda i, h: (i, 0)),
            scratch_shapes=[pltpu.VMEM((tm, d_out_pad), jnp.float32)],
        ),
        compiler_params=pltpu.CompilerParams(
            dimension_semantics=("parallel", "arbitrary"),
            vmem_limit_bytes=vmem_limit),
    )(x2, w1c, b1r, w2c, b2r)

    out = out[:m, :d_out]
    return out.reshape(*lead, d_out)


def reference_mlp(x, w1, b1, w2, b2, exact_gelu=True):
    """Pure-JAX reference mirroring the PyTorch forward (erf GELU, p=0 dropout)."""
    h = x @ w1 + b1
    h = _gelu(h, exact_gelu)
    return h @ w2 + b2


if __name__ == "__main__":
    B, N = 2, 8
    in_features, hidden_features, out_features = 32, 128, 32

    key = jax.random.PRNGKey(0)
    kx, kw1, kb1, kw2, kb2 = jax.random.split(key, 5)

    x = jax.random.normal(kx, (B, N, in_features), dtype=jnp.float32)

    # nn.Linear-style init, weights stored transposed as (in, out).
    bound1 = 1.0 / math.sqrt(in_features)
    bound2 = 1.0 / math.sqrt(hidden_features)
    w1 = jax.random.uniform(kw1, (in_features, hidden_features), jnp.float32, -bound1, bound1)
    b1 = jax.random.uniform(kb1, (hidden_features,), jnp.float32, -bound1, bound1)
    w2 = jax.random.uniform(kw2, (hidden_features, out_features), jnp.float32, -bound2, bound2)
    b2 = jax.random.uniform(kb2, (out_features,), jnp.float32, -bound2, bound2)

    exact = _erf_lowers_on_tpu()
    ref = reference_mlp(x, w1, b1, w2, b2, exact_gelu=exact)

    # Default path: bf16 MXU inputs, f32 accumulation -> looser tolerance.
    out_bf16 = jax.block_until_ready(mlp_forward(x, w1, b1, w2, b2))
    assert out_bf16.shape == (B, N, out_features)
    assert jnp.allclose(out_bf16, ref, atol=5e-2, rtol=5e-2), "bf16-path mismatch vs reference"

    # Full-precision path: verifies the kernel math tightly.
    out_f32 = jax.block_until_ready(
        mlp_forward(x, w1, b1, w2, b2, matmul_dtype=jnp.float32))
    assert out_f32.shape == (B, N, out_features)
    assert jnp.allclose(out_f32, ref, atol=1e-4, rtol=1e-4), "f32-path mismatch vs reference"

    print("KERNEL_OK")
</pallas_src>

<mosaic_0001>
module attributes {stable_mosaic.version = 11 : i64} {
  func.func @probe(%arg0: memref<8x128xf32, #tpu.memory_space<vmem>>, %arg1: memref<8x128xf32, #tpu.memory_space<vmem>>) attributes {dimension_semantics = [], scalar_prefetch = 0 : i64, scratch_operands = 0 : i64, tpu.core_type = #tpu.core_type<tc>} {
    %c0 = arith.constant 0 : index
    %c0_0 = arith.constant 0 : index
    %0 = vector.load %arg0[%c0, %c0_0] : memref<8x128xf32, #tpu.memory_space<vmem>>, vector<8x128xf32>
    %1 = math.erf %0 : vector<8x128xf32>
    %c0_1 = arith.constant 0 : index
    %c0_2 = arith.constant 0 : index
    %2 = vector.load %arg1[%c0_1, %c0_2] : memref<8x128xf32, #tpu.memory_space<vmem>>, vector<8x128xf32>
    tpu.vector_store %arg1[%c0_1, %c0_2], %1 {strides = array<i32>} : memref<8x128xf32, #tpu.memory_space<vmem>>, vector<8x128xf32>,
    return
  }
}

module attributes {stable_mosaic.version = 11 : i64} {
  func.func @mlp_kernel(%arg0: i32, %arg1: i32, %arg2: memref<16x32xf32, #tpu.memory_space<vmem>>, %arg3: memref<32x128xbf16, #tpu.memory_space<vmem>>, %arg4: memref<1x128xf32, #tpu.memory_space<vmem>>, %arg5: memref<128x128xbf16, #tpu.memory_space<vmem>>, %arg6: memref<1x128xf32, #tpu.memory_space<vmem>>, %arg7: memref<16x128xf32, #tpu.memory_space<vmem>>, %arg8: memref<16x128xf32, #tpu.memory_space<vmem>>) attributes {dimension_semantics = [#tpu.dimension_semantics<parallel>, #tpu.dimension_semantics<arbitrary>], iteration_bounds = array<i64: 1, 1>, scalar_prefetch = 0 : i64, scratch_operands = 1 : i64, tpu.core_type = #tpu.core_type<tc>, window_params = [{transform_indices = @transform_0, window_bounds = array<i64: 16, 32>}, {pipeline_mode = #tpu.pipeline_mode<synchronous>, transform_indices = @transform_1, window_bounds = array<i64: 32, 128>}, {pipeline_mode = #tpu.pipeline_mode<synchronous>, transform_indices = @transform_2, window_bounds = array<i64: 1, 128>}, {pipeline_mode = #tpu.pipeline_mode<synchronous>, transform_indices = @transform_3, window_bounds = array<i64: 128, 128>}, {pipeline_mode = #tpu.pipeline_mode<synchronous>, transform_indices = @transform_4, window_bounds = array<i64: 1, 128>}, {transform_indices = @transform_5, window_bounds = array<i64: 16, 128>}]} {
    %c0_i32 = arith.constant 0 : i32
    %0 = arith.cmpi eq, %arg1, %c0_i32 : i32
    %1 = arith.extui %0 : i1 to i32
    %c0_i32_0 = arith.constant 0 : i32
    %2 = arith.cmpi ne, %1, %c0_i32_0 : i32
    scf.if %2 {
      %cst_19 = arith.constant 0.000000e+00 : f32
      %32 = vector.broadcast %cst_19 : f32 to vector<16x128xf32>
      %c0_20 = arith.constant 0 : index
      %c0_21 = arith.constant 0 : index
      %33 = vector.load %arg8[%c0_20, %c0_21] : memref<16x128xf32, #tpu.memory_space<vmem>>, vector<16x128xf32>
      tpu.vector_store %arg8[%c0_20, %c0_21], %32 {strides = array<i32>} : memref<16x128xf32, #tpu.memory_space<vmem>>, vector<16x128xf32>,
    } else {
    }
    %c0 = arith.constant 0 : index
    %c0_1 = arith.constant 0 : index
    %3 = vector.load %arg2[%c0, %c0_1] : memref<16x32xf32, #tpu.memory_space<vmem>>, vector<16x32xf32>
    %4 = arith.truncf %3 : vector<16x32xf32> to vector<16x32xbf16>
    %c0_2 = arith.constant 0 : index
    %c0_3 = arith.constant 0 : index
    %5 = vector.load %arg3[%c0_2, %c0_3] : memref<32x128xbf16, #tpu.memory_space<vmem>>, vector<32x128xbf16>
    %cst = arith.constant dense<0.000000e+00> : vector<16x128xf32>
    %6 = tpu.matmul %4, %5, %cst {dimension_numbers = #tpu.dot_dimension_numbers<[1], [0], [0], [1], [0, 0, 1, 1], [], []>} : vector<16x32xbf16>, vector<32x128xbf16>, vector<16x128xf32> -> vector<16x128xf32>
    %c0_4 = arith.constant 0 : index
    %c0_5 = arith.constant 0 : index
    %7 = vector.load %arg4[%c0_4, %c0_5] : memref<1x128xf32, #tpu.memory_space<vmem>>, vector<1x128xf32>
    %8 = vector.broadcast %7 : vector<1x128xf32> to vector<16x128xf32>
    %9 = arith.addf %6, %8 : vector<16x128xf32>
    %10 = arith.mulf %9, %9 : vector<16x128xf32>
    %11 = arith.mulf %10, %9 : vector<16x128xf32>
    %cst_6 = arith.constant 4.471500e-02 : f32
    %12 = vector.broadcast %cst_6 : f32 to vector<16x128xf32>
    %13 = arith.mulf %12, %11 : vector<16x128xf32>
    %14 = arith.addf %9, %13 : vector<16x128xf32>
    %cst_7 = arith.constant 0.797884583 : f32
    %15 = vector.broadcast %cst_7 : f32 to vector<16x128xf32>
    %16 = arith.mulf %15, %14 : vector<16x128xf32>
    %cst_8 = arith.constant 5.000000e-01 : f32
    %17 = vector.broadcast %cst_8 : f32 to vector<16x128xf32>
    %18 = arith.mulf %17, %9 : vector<16x128xf32>
    %19 = math.tanh %16 : vector<16x128xf32>
    %cst_9 = arith.constant 1.000000e+00 : f32
    %20 = vector.broadcast %cst_9 : f32 to vector<16x128xf32>
    %21 = arith.addf %20, %19 : vector<16x128xf32>
    %22 = arith.mulf %18, %21 : vector<16x128xf32>
    %c0_10 = arith.constant 0 : index
    %c0_11 = arith.constant 0 : index
    %23 = vector.load %arg8[%c0_10, %c0_11] : memref<16x128xf32, #tpu.memory_space<vmem>>, vector<16x128xf32>
    %24 = arith.truncf %22 : vector<16x128xf32> to vector<16x128xbf16>
    %c0_12 = arith.constant 0 : index
    %c0_13 = arith.constant 0 : index
    %25 = vector.load %arg5[%c0_12, %c0_13] : memref<128x128xbf16, #tpu.memory_space<vmem>>, vector<128x128xbf16>
    %cst_14 = arith.constant dense<0.000000e+00> : vector<16x128xf32>
    %26 = tpu.matmul %24, %25, %cst_14 {dimension_numbers = #tpu.dot_dimension_numbers<[1], [0], [0], [1], [0, 0, 1, 1], [], []>} : vector<16x128xbf16>, vector<128x128xbf16>, vector<16x128xf32> -> vector<16x128xf32>
    %27 = arith.addf %23, %26 : vector<16x128xf32>
    %c0_15 = arith.constant 0 : index
    %c0_16 = arith.constant 0 : index
    %28 = vector.load %arg8[%c0_15, %c0_16] : memref<16x128xf32, #tpu.memory_space<vmem>>, vector<16x128xf32>
    tpu.vector_store %arg8[%c0_15, %c0_16], %27 {strides = array<i32>} : memref<16x128xf32, #tpu.memory_space<vmem>>, vector<16x128xf32>,
    %c0_i32_17 = arith.constant 0 : i32
    %29 = arith.cmpi eq, %arg1, %c0_i32_17 : i32
    %30 = arith.extui %29 : i1 to i32
    %c0_i32_18 = arith.constant 0 : i32
    %31 = arith.cmpi ne, %30, %c0_i32_18 : i32
    scf.if %31 {
      %c0_19 = arith.constant 0 : index
      %c0_20 = arith.constant 0 : index
      %32 = vector.load %arg8[%c0_19, %c0_20] : memref<16x128xf32, #tpu.memory_space<vmem>>, vector<16x128xf32>
      %c0_21 = arith.constant 0 : index
      %c0_22 = arith.constant 0 : index
      %33 = vector.load %arg6[%c0_21, %c0_22] : memref<1x128xf32, #tpu.memory_space<vmem>>, vector<1x128xf32>
      %34 = vector.broadcast %33 : vector<1x128xf32> to vector<16x128xf32>
      %35 = arith.addf %32, %34 : vector<16x128xf32>
      %c0_23 = arith.constant 0 : index
      %c0_24 = arith.constant 0 : index
      %36 = vector.load %arg7[%c0_23, %c0_24] : memref<16x128xf32, #tpu.memory_space<vmem>>, vector<16x128xf32>
      tpu.vector_store %arg7[%c0_23, %c0_24], %35 {strides = array<i32>} : memref<16x128xf32, #tpu.memory_space<vmem>>, vector<16x128xf32>,
    } else {
    }
    return
  }
  func.func @transform_0(%arg0: i32, %arg1: i32) -> (i32, i32) {
    %c0_i32 = arith.constant 0 : i32
    %c0_i32_0 = arith.constant 0 : i32
    return %arg0, %c0_i32 : i32, i32
  }
  func.func @transform_1(%arg0: i32, %arg1: i32) -> (i32, i32) {
    %c0_i32 = arith.constant 0 : i32
    %c0_i32_0 = arith.constant 0 : i32
    return %c0_i32, %arg1 : i32, i32
  }
  func.func @transform_2(%arg0: i32, %arg1: i32) -> (i32, i32) {
    %c0_i32 = arith.constant 0 : i32
    %c0_i32_0 = arith.constant 0 : i32
    return %c0_i32, %arg1 : i32, i32
  }
  func.func @transform_3(%arg0: i32, %arg1: i32) -> (i32, i32) {
    %c0_i32 = arith.constant 0 : i32
    %c0_i32_0 = arith.constant 0 : i32
    return %arg1, %c0_i32 : i32, i32
  }
  func.func @transform_4(%arg0: i32, %arg1: i32) -> (i32, i32) {
    %c0_i32 = arith.constant 0 : i32
    %c0_i32_0 = arith.constant 0 : i32
    %c0_i32_1 = arith.constant 0 : i32
    return %c0_i32, %c0_i32_0 : i32, i32
  }
  func.func @transform_5(%arg0: i32, %arg1: i32) -> (i32, i32) {
    %c0_i32 = arith.constant 0 : i32
    %c0_i32_0 = arith.constant 0 : i32
    return %arg0, %c0_i32 : i32, i32
  }
}

</mosaic_0001>

<llo_original>
// kernel: tpu_custom_call.1
$region0: #{tpu_custom_call.1}
  #allocation0 [shape = 'u32[]', space=smem, size = 0x4, offset = 0x4, fixed_abs, tag = 'smem constant byte address 0x4 - core index']
  #allocation1 [shape = 'u32[144,128]{1,0:T(1,128)}', space=vmem, size = 0x12000, scoped, tag = 'internal scratch']
  %s0 = inlined_call_operand.hbm [shape: f32[8,128], index: 0, kind: input, shape index: {}]
  %s1 = inlined_call_operand.hbm [shape: f32[8,128], index: 1, kind: output, shape index: {}]
  %s2 = sld [smem:[#allocation0]]
  $region18: #{tpu_custom_call.1} parent=0
    _
  %s4 = ssub.s32 1, %s2
  %s5 = scalar_select 0, %s4, %s2
  $region1: #{tpu_custom_call.1} parent=0
    #allocation2 [shape = 'u8[4096]{0}', space=vmem, size = 0x1000, scoped, tag = 'input window, operand 0, single buffered']
    #allocation3 [shape = 's32[1]{0}', space=sflag, size = 0x4, scoped, tag = 'scoped memory for tpu_custom_call.1']
    #allocation4 [shape = 's32[1]{0}', space=sflag, size = 0x4, scoped, tag = 'scoped memory for tpu_custom_call.1']
    #allocation5 [shape = 'u8[4096]{0}', space=vmem, size = 0x1000, scoped, tag = 'output window, operand 0, single buffered']
    %6 = vsyncpa [#allocation3], 0
    %7 = vsyncpa [#allocation4], 0
    // Predicated region
    $region2: #{tpu_custom_call.1} parent=1 // pred_check
      _
    $region3: #{tpu_custom_call.1} parent=1 // pred_check_branch
      %9 = sbr.rel (0) target = $region5
    $region4: #{tpu_custom_call.1} parent=1 // pred_region
      %s11 = ssub.s32 128, 128
      %12 = vsyncadd [#allocation3], %s11
      %s14 = sshll.u32 [#allocation2], 4
      %s15 = int_to_ptr.vmem [resolvable:$true] %s14
      %17 = dma.hbm_to_vmem [thread:$0]  %s0, 128, %s15, [#allocation3]
    $region5: #{tpu_custom_call.1} parent=1 // pred_fallthru
      _
    // Predicated region
    $region6: #{tpu_custom_call.1} parent=1 // pred_check
      _
    $region7: #{tpu_custom_call.1} parent=1 // pred_check_branch
      %19 = sbr.rel (0) target = $region9
    $region8: #{tpu_custom_call.1} parent=1 // pred_region
      %20 = dma.done [#allocation3], 128
    $region9: #{tpu_custom_call.1} parent=1 // pred_fallthru
      _
    %v21 = vld [vmem:[#allocation2] sm:$0xff]
    %v22 = verf.f32.pop %v21
    %23 = vst [vmem:[#allocation5] sm:$0xff] %v22
    // Predicated region
    $region10: #{tpu_custom_call.1} parent=1 // pred_check
      _
    $region11: #{tpu_custom_call.1} parent=1 // pred_check_branch
      %25 = sbr.rel (0) target = $region13
    $region12: #{tpu_custom_call.1} parent=1 // pred_region
      %s27 = ssub.s32 128, 128
      %28 = vsyncadd [#allocation4], %s27
      %s30 = sshll.u32 [#allocation5], 4
      %s31 = int_to_ptr.vmem [resolvable:$true] %s30
      %33 = dma.vmem_to_hbm [thread:$0]  %s31, 128, %s1, [#allocation4]
    $region13: #{tpu_custom_call.1} parent=1 // pred_fallthru
      _
    // Predicated region
    $region14: #{tpu_custom_call.1} parent=1 // pred_check
      _
    $region15: #{tpu_custom_call.1} parent=1 // pred_check_branch
      %35 = sbr.rel (0) target = $region17
    $region16: #{tpu_custom_call.1} parent=1 // pred_region
      %36 = dma.done [#allocation4], 128
    $region17: #{tpu_custom_call.1} parent=1 // pred_fallthru
      _
    %37 = vsyncpa [#allocation3], 1
    %38 = vsyncpa [#allocation4], 1

// kernel: tpu_custom_call.1
$region0: #{tpu_custom_call.1}
  #allocation0 [shape = 'u32[]', space=smem, size = 0x4, offset = 0x4, fixed_abs, tag = 'smem constant byte address 0x4 - core index']
  #allocation1 [shape = 'u32[144,128]{1,0:T(1,128)}', space=vmem, size = 0x12000, scoped, tag = 'internal scratch']
  #allocation2 [shape = 'f32[16,128]{1,0:T(8,128)}', space=vmem, size = 0x2000, scoped, tag = 'scratch operand']
  %s0 = inlined_call_operand.hbm [shape: f32[16,32], index: 0, kind: input, shape index: {}]
  %s1 = inlined_call_operand.hbm [shape: bf16[32,128], index: 1, kind: input, shape index: {}]
  %s2 = inlined_call_operand.vmem [shape: f32[1,128], index: 2, kind: input, shape index: {}]
  %s3 = inlined_call_operand.hbm [shape: bf16[128,128], index: 3, kind: input, shape index: {}]
  %s4 = inlined_call_operand.vmem [shape: f32[1,128], index: 4, kind: input, shape index: {}]
  %s5 = inlined_call_operand.hbm [shape: f32[16,128], index: 5, kind: output, shape index: {}]
  %s6 = sld [smem:[#allocation0]]
  $region50: #{tpu_custom_call.1} parent=0
    _
  %s8 = ssub.s32 1, %s6
  %s9 = scalar_select 0, %s8, %s6
  $region1: #{tpu_custom_call.1} parent=0
    #allocation3 [shape = 'u8[8192]{0}', space=vmem, size = 0x2000, scoped, tag = 'input window, operand 0, single buffered']
    #allocation4 [shape = 's32[1]{0}', space=sflag, size = 0x4, scoped, tag = 'scoped memory for tpu_custom_call.1']
    #allocation5 [shape = 's32[1]{0}', space=sflag, size = 0x4, scoped, tag = 'scoped memory for tpu_custom_call.1']
    #allocation6 [shape = 'u8[8192]{0}', space=vmem, size = 0x2000, scoped, tag = 'input window, operand 1, single buffered']
    #allocation7 [shape = 's32[1]{0}', space=sflag, size = 0x4, scoped, tag = 'scoped memory for tpu_custom_call.1']
    #allocation8 [shape = 'u8[32768]{0}', space=vmem, size = 0x8000, scoped, tag = 'input window, operand 3, single buffered']
    #allocation9 [shape = 'u8[8192]{0}', space=vmem, size = 0x2000, scoped, tag = 'output window, operand 0, single buffered']
    %10 = vsyncpa [#allocation4], 0
    %11 = vsyncpa [#allocation7], 0
    %12 = vsyncpa [#allocation5], 0
    // Predicated region
    $region2: #{tpu_custom_call.1} parent=1 // pred_check
      _
    $region3: #{tpu_custom_call.1} parent=1 // pred_check_branch
      %14 = sbr.rel (0) target = $region5
    $region4: #{tpu_custom_call.1} parent=1 // pred_region
      %s16 = ssub.s32 256, 256
      %17 = vsyncadd [#allocation4], %s16
      %s18 = sshll.u32 [#allocation3], 4
      %s19 = int_to_ptr.vmem [resolvable:$true] %s18
      %24 = dma.hbm_to_vmem [thread:$0]  %s0, 256, %s19, [#allocation4], 128, 128, 8
    $region5: #{tpu_custom_call.1} parent=1 // pred_fallthru
      _
    // Predicated region
    $region6: #{tpu_custom_call.1} parent=1 // pred_check
      _
    $region7: #{tpu_custom_call.1} parent=1 // pred_check_branch
      %26 = sbr.rel (0) target = $region9
    $region8: #{tpu_custom_call.1} parent=1 // pred_region
      %s28 = ssub.s32 256, 256
      %29 = vsyncadd [#allocation7], %s28
      %s30 = sshll.u32 [#allocation6], 4
      %s31 = int_to_ptr.vmem [resolvable:$true] %s30
      %36 = dma.hbm_to_vmem [thread:$0]  %s1, 256, %s31, [#allocation7], 64, 64, 4
    $region9: #{tpu_custom_call.1} parent=1 // pred_fallthru
      _
    // Predicated region
    $region10: #{tpu_custom_call.1} parent=1 // pred_check
      _
    $region11: #{tpu_custom_call.1} parent=1 // pred_check_branch
      %38 = sbr.rel (0) target = $region13
    $region12: #{tpu_custom_call.1} parent=1 // pred_region
      _
    $region13: #{tpu_custom_call.1} parent=1 // pred_fallthru
      _
    // Predicated region
    $region14: #{tpu_custom_call.1} parent=1 // pred_check
      _
    $region15: #{tpu_custom_call.1} parent=1 // pred_check_branch
      %40 = sbr.rel (0) target = $region17
    $region16: #{tpu_custom_call.1} parent=1 // pred_region
      %s42 = ssub.s32 1024, 1024
      %43 = vsyncadd [#allocation7], %s42
      %s44 = sshll.u32 [#allocation8], 4
      %s45 = int_to_ptr.vmem [resolvable:$true] %s44
      %50 = dma.hbm_to_vmem [thread:$0]  %s3, 1024, %s45, [#allocation7], 64, 64, 4
    $region17: #{tpu_custom_call.1} parent=1 // pred_fallthru
      _
    // Predicated region
    $region18: #{tpu_custom_call.1} parent=1 // pred_check
      _
    $region19: #{tpu_custom_call.1} parent=1 // pred_check_branch
      %52 = sbr.rel (0) target = $region21
    $region20: #{tpu_custom_call.1} parent=1 // pred_region
      _
    $region21: #{tpu_custom_call.1} parent=1 // pred_fallthru
      _
    // Predicated region
    $region22: #{tpu_custom_call.1} parent=1 // pred_check
      _
    $region23: #{tpu_custom_call.1} parent=1 // pred_check_branch
      %54 = sbr.rel (0) target = $region25
    $region24: #{tpu_custom_call.1} parent=1 // pred_region
      %55 = dma.done [#allocation4], 256
    $region25: #{tpu_custom_call.1} parent=1 // pred_fallthru
      _
    // Predicated region
    $region26: #{tpu_custom_call.1} parent=1 // pred_check
      _
    $region27: #{tpu_custom_call.1} parent=1 // pred_check_branch
      %57 = sbr.rel (0) target = $region29
    $region28: #{tpu_custom_call.1} parent=1 // pred_region
      %58 = dma.done [#allocation7], 256
    $region29: #{tpu_custom_call.1} parent=1 // pred_fallthru
      _
    // Predicated region
    $region30: #{tpu_custom_call.1} parent=1 // pred_check
      _
    $region31: #{tpu_custom_call.1} parent=1 // pred_check_branch
      %60 = sbr.rel (0) target = $region33
    $region32: #{tpu_custom_call.1} parent=1 // pred_region
      %61 = dma.done [#allocation7], 1024
    $region33: #{tpu_custom_call.1} parent=1 // pred_fallthru
      _
    %p63 = scmp.eq.s32.totalorder 0, 0
    // Predicated region
    $region34: #{tpu_custom_call.1} parent=1 // pred_check
      %p64 = pneg %p63
    $region35: #{tpu_custom_call.1} parent=1 // pred_check_branch
      %66 = sbr.rel (%p64) target = $region37
    $region36: #{tpu_custom_call.1} parent=1 // pred_region
      %67 = vst [vmem:[#allocation2] sm:$0xff] 0.0
      %68 = vst [vmem:[#allocation2 + $0x8] sm:$0xff] 0.0
    $region37: #{tpu_custom_call.1} parent=1 // pred_fallthru
      _
    %v69 = vld [vmem:[#allocation3] sm:$0xff]
    %v70 = vld [vmem:[#allocation3 + $0x8] sm:$0xff]
    %v71 = vpack.c.bf16 %v70, %v69
    %v72 = vld [vmem:[#allocation6] sm:$0xf]
    %v73 = vld [vmem:[#allocation6 + $0x4] sm:$0xf]
    %v74 = vld [vmem:[#allocation6 + $0x8] sm:$0xf]
    %v75 = vld [vmem:[#allocation6 + $0xc] sm:$0xf]
    %v76 = vld [vmem:[%s2] sm:$0x1]
    %v78 = vlaneseq
    %v79 = vshrl.u32 %v78, 7
    %v80 = vsub.s32 0, %v79
    %v81 = vrot.slane %v76, %v80
    %v87 = vunpack.c.l.b16 %v72
    %v88 = vunpack.c.l.b16 %v73
    %v89 = vunpack.c.l.b16 %v74
    %v90 = vunpack.c.l.b16 %v75
    %v91 = vpack.c.b16 %v88, %v87
    %v92 = vpack.c.b16 %v90, %v89
    %vm95 = vcmask 261120
    %v97 = vsel %vm95, %v71, 0
    %99 = vmatprep.subr.bf16.mxu0 0
    %100 = vmatpush1.bf16.msra.mxu0 %v91
    %101 = vmatprep.subr.bf16.mxu0 0
    %102 = vmatpush1.bf16.msra.mxu0 %v92
    %103 = vmatprep.subr.bf16.mxu0 0
    %104 = vmatpush1.bf16.msra.mxu0 0
    %105 = vmatprep.subr.bf16.mxu0 0
    %106 = vmatpush1.bf16.msra.mxu0 0
    %107 = vmatprep.subr.bf16.mxu0 0
    %108 = vmatpush1.bf16.msra.mxu0 0
    %109 = vmatprep.subr.bf16.mxu0 0
    %110 = vmatpush1.bf16.msra.mxu0 0
    %111 = vmatprep.subr.bf16.mxu0 0
    %112 = vmatpush1.bf16.msra.mxu0 0
    %113 = vmatprep.subr.bf16.mxu0 0
    %114 = vmatpush1.bf16.msra.mxu0 0
    %115 = vmatprep.subr.bf16.mxu0 0
    %116 = vmatpush1.bf16.msra.mxu0 0
    %117 = vmatprep.subr.bf16.mxu0 0
    %118 = vmatpush1.bf16.msra.mxu0 0
    %119 = vmatprep.subr.bf16.mxu0 0
    %120 = vmatpush1.bf16.msra.mxu0 0
    %121 = vmatprep.subr.bf16.mxu0 0
    %122 = vmatpush1.bf16.msra.mxu0 0
    %123 = vmatprep.subr.bf16.mxu0 0
    %124 = vmatpush1.bf16.msra.mxu0 0
    %125 = vmatprep.subr.bf16.mxu0 0
    %126 = vmatpush1.bf16.msra.mxu0 0
    %127 = vmatprep.subr.bf16.mxu0 0
    %128 = vmatpush1.bf16.msra.mxu0 0
    %129 = vmatprep.subr.bf16.mxu0 0
    %130 = vmatpush1.bf16.msra.mxu0 0
    %131 = vmatprep.mubr.bf16.mxu0 0
    %132 = vmatmul.mubr.bf16.gmra.mrb[0].mxu0 %v97
    %v133 = vpop.f32.mrb[0].mxu0
    %v134 = vadd.f32 %v81, %v133
    %v135 = vpop.f32.mrb[0].mxu0
    %v136 = vpop.f32.mrb[0].mxu0
    %v137 = vadd.f32 %v81, %v136
    %v138 = vpop.f32.mrb[0].mxu0
    %139 = vdwg.mxu0
    %v140 = vmul.f32 %v134, %v134
    %v141 = vmul.f32 %v137, %v137
    %v142 = vmul.f32 %v140, %v134
    %v143 = vmul.f32 %v141, %v137
    %v144 = vmul.f32 %v142, 0.044715
    %v145 = vmul.f32 %v143, 0.044715
    %v146 = vadd.f32 %v134, %v144
    %v147 = vadd.f32 %v137, %v145
    %v148 = vmul.f32 %v146, 0.7978846
    %v149 = vmul.f32 %v147, 0.7978846
    %v150 = vmul.f32 %v134, 0.5
    %v151 = vmul.f32 %v137, 0.5
    %v152 = vtanh.pop %v148
    %v153 = vtanh.pop %v149
    %v154 = vadd.f32 %v152, 1.0
    %v155 = vadd.f32 %v153, 1.0
    %v156 = vmul.f32 %v150, %v154
    %v157 = vmul.f32 %v151, %v155
    %v158 = vld [vmem:[#allocation2] sm:$0xff]
    %v159 = vld [vmem:[#allocation2 + $0x8] sm:$0xff]
    %v160 = vpack.c.bf16 %v157, %v156
    %v161 = vld [vmem:[#allocation8] sm:$0xf]
    %v162 = vld [vmem:[#allocation8 + $0x4] sm:$0xf]
    %v163 = vld [vmem:[#allocation8 + $0x8] sm:$0xf]
    %v164 = vld [vmem:[#allocation8 + $0xc] sm:$0xf]
    %v165 = vld [vmem:[#allocation8 + $0x10] sm:$0xf]
    %v166 = vld [vmem:[#allocation8 + $0x14] sm:$0xf]
    %v167 = vld [vmem:[#allocation8 + $0x18] sm:$0xf]
    %v168 = vld [vmem:[#allocation8 + $0x1c] sm:$0xf]
    %v169 = vld [vmem:[#allocation8 + $0x20] sm:$0xf]
    %v170 = vld [vmem:[#allocation8 + $0x24] sm:$0xf]
    %v171 = vld [vmem:[#allocation8 + $0x28] sm:$0xf]
    %v172 = vld [vmem:[#allocation8 + $0x2c] sm:$0xf]
    %v173 = vld [vmem:[#allocation8 + $0x30] sm:$0xf]
    %v174 = vld [vmem:[#allocation8 + $0x34] sm:$0xf]
    %v175 = vld [vmem:[#allocation8 + $0x38] sm:$0xf]
    %v176 = vld [vmem:[#allocation8 + $0x3c] sm:$0xf]
    %v193 = vunpack.c.l.b16 %v161
    %v194 = vunpack.c.l.b16 %v162
    %v195 = vunpack.c.l.b16 %v163
    %v196 = vunpack.c.l.b16 %v164
    %v197 = vunpack.c.l.b16 %v165
    %v198 = vunpack.c.l.b16 %v166
    %v199 = vunpack.c.l.b16 %v167
    %v200 = vunpack.c.l.b16 %v168
    %v201 = vunpack.c.l.b16 %v169
    %v202 = vunpack.c.l.b16 %v170
    %v203 = vunpack.c.l.b16 %v171
    %v204 = vunpack.c.l.b16 %v172
    %v205 = vunpack.c.l.b16 %v173
    %v206 = vunpack.c.l.b16 %v174
    %v207 = vunpack.c.l.b16 %v175
    %v208 = vunpack.c.l.b16 %v176
    %v209 = vpack.c.b16 %v194, %v193
    %v210 = vpack.c.b16 %v196, %v195
    %v211 = vpack.c.b16 %v198, %v197
    %v212 = vpack.c.b16 %v200, %v199
    %v213 = vpack.c.b16 %v202, %v201
    %v214 = vpack.c.b16 %v204, %v203
    %v215 = vpack.c.b16 %v206, %v205
    %v216 = vpack.c.b16 %v208, %v207
    %225 = vmatprep.subr.bf16.mxu0 0
    %226 = vmatpush1.bf16.msra.mxu0 %v209
    %227 = vmatprep.subr.bf16.mxu0 0
    %228 = vmatpush1.bf16.msra.mxu0 %v210
    %229 = vmatprep.subr.bf16.mxu0 0
    %230 = vmatpush1.bf16.msra.mxu0 %v211
    %231 = vmatprep.subr.bf16.mxu0 0
    %232 = vmatpush1.bf16.msra.mxu0 %v212
    %233 = vmatprep.subr.bf16.mxu0 0
    %234 = vmatpush1.bf16.msra.mxu0 %v213
    %235 = vmatprep.subr.bf16.mxu0 0
    %236 = vmatpush1.bf16.msra.mxu0 %v214
    %237 = vmatprep.subr.bf16.mxu0 0
    %238 = vmatpush1.bf16.msra.mxu0 %v215
    %239 = vmatprep.subr.bf16.mxu0 0
    %240 = vmatpush1.bf16.msra.mxu0 %v216
    %241 = vmatprep.subr.bf16.mxu0 0
    %242 = vmatpush1.bf16.msra.mxu0 0
    %243 = vmatprep.subr.bf16.mxu0 0
    %244 = vmatpush1.bf16.msra.mxu0 0
    %245 = vmatprep.subr.bf16.mxu0 0
    %246 = vmatpush1.bf16.msra.mxu0 0
    %247 = vmatprep.subr.bf16.mxu0 0
    %248 = vmatpush1.bf16.msra.mxu0 0
    %249 = vmatprep.subr.bf16.mxu0 0
    %250 = vmatpush1.bf16.msra.mxu0 0
    %251 = vmatprep.subr.bf16.mxu0 0
    %252 = vmatpush1.bf16.msra.mxu0 0
    %253 = vmatprep.subr.bf16.mxu0 0
    %254 = vmatpush1.bf16.msra.mxu0 0
    %255 = vmatprep.subr.bf16.mxu0 0
    %256 = vmatpush1.bf16.msra.mxu0 0
    %257 = vmatprep.mubr.bf16.mxu0 0
    %258 = vmatmul.mubr.bf16.gmra.mrb[0].mxu0 %v160
    %v259 = vpop.f32.mrb[0].mxu0
    %v260 = vadd.f32 0.0, %v259
    %v261 = vpop.f32.mrb[0].mxu0
    %v262 = vpop.f32.mrb[0].mxu0
    %v263 = vadd.f32 0.0, %v262
    %v264 = vpop.f32.mrb[0].mxu0
    %265 = vdwg.mxu0
    %v266 = vadd.f32 %v158, %v260
    %v267 = vadd.f32 %v159, %v263
    %268 = vst [vmem:[#allocation2] sm:$0xff] %v266
    %269 = vst [vmem:[#allocation2 + $0x8] sm:$0xff] %v267
    // Predicated region
    $region38: #{tpu_custom_call.1} parent=1 // pred_check
      %p270 = pneg %p63
    $region39: #{tpu_custom_call.1} parent=1 // pred_check_branch
      %272 = sbr.rel (%p270) target = $region41
    $region40: #{tpu_custom_call.1} parent=1 // pred_region
      %v273 = vld [vmem:[#allocation2] sm:$0xff]
      %v274 = vld [vmem:[#allocation2 + $0x8] sm:$0xff]
      %v275 = vld [vmem:[%s4] sm:$0x1]
      %v277 = vlaneseq
      %v278 = vshrl.u32 %v277, 7
      %v279 = vsub.s32 0, %v278
      %v280 = vrot.slane %v275, %v279
      %v282 = vadd.f32 %v273, %v280
      %v283 = vadd.f32 %v274, %v280
      %284 = vst [vmem:[#allocation9] sm:$0xff] %v282
      %285 = vst [vmem:[#allocation9 + $0x8] sm:$0xff] %v283
    $region41: #{tpu_custom_call.1} parent=1 // pred_fallthru
      _
    // Predicated region
    $region42: #{tpu_custom_call.1} parent=1 // pred_check
      _
    $region43: #{tpu_custom_call.1} parent=1 // pred_check_branch
      %287 = sbr.rel (0) target = $region45
    $region44: #{tpu_custom_call.1} parent=1 // pred_region
      %s289 = ssub.s32 256, 256
      %290 = vsyncadd [#allocation5], %s289
      %s291 = sshll.u32 [#allocation9], 4
      %s292 = int_to_ptr.vmem [resolvable:$true] %s291
      %297 = dma.vmem_to_hbm [thread:$0]  %s292, 256, %s5, [#allocation5], 128, 128, 8
    $region45: #{tpu_custom_call.1} parent=1 // pred_fallthru
      _
    // Predicated region
    $region46: #{tpu_custom_call.1} parent=1 // pred_check
      _
    $region47: #{tpu_custom_call.1} parent=1 // pred_check_branch
      %299 = sbr.rel (0) target = $region49
    $region48: #{tpu_custom_call.1} parent=1 // pred_region
      %300 = dma.done [#allocation5], 256
    $region49: #{tpu_custom_call.1} parent=1 // pred_fallthru
      _
    %301 = vsyncpa [#allocation4], 1
    %302 = vsyncpa [#allocation7], 1
    %303 = vsyncpa [#allocation5], 1

</llo_original>
